<compile_context>
chip_gen: v5e
topology: v5e:2x2
jax: 0.10.0
libtpu: 0.0.40
codegen_flags: <defaults>
</compile_context>

<pallas_src>
import functools

import jax
import jax.numpy as jnp
from jax.experimental import pallas as pl
from jax.experimental.pallas import tpu as pltpu


def _rnn_regressor6_kernel(
    x_ref,        # (B*T, D_in)   batch-first flattened input (row = b*T + t)
    wih_ref,      # (D_in, H1)    RNN input weights (transposed)
    whh_ref,      # (H1, H1)      RNN hidden weights (transposed)
    brnn_ref,     # (1, H1)       b_ih + b_hh (pre-summed in wrapper)
    w1_ref, b1_ref,   # (H1, H1), (1, H1)
    w2_ref, b2_ref,   # (H1, H1), (1, H1)
    w3_ref, b3_ref,   # (H1, H2), (1, H2)
    w4_ref, b4_ref,   # (H2, H2), (1, H2)
    w5_ref, b5_ref,   # (H2, O),  (1, O)
    out_ref,          # (B, O)
    *, batch, seq_len,
):
    B = batch
    T = seq_len
    H1 = whh_ref.shape[0]

    whh = whh_ref[...]

    # --- input projection hoisted out of the recurrence ---------------------
    # One batched MXU matmul + one bias broadcast for all T timesteps.
    xw = (jnp.dot(x_ref[...], wih_ref[...], preferred_element_type=jnp.float32)
          + brnn_ref[...])                       # (B*T, H1)
    xw = xw.reshape(B, T, H1)                    # row b*T + t  ->  [b, t, :]

    # --- recurrence: only add + h @ W_hh + tanh remain per step -------------
    # Fully unrolled (T static, tiny): static slices, scheduler sees across steps.
    h = jnp.tanh(xw[:, 0, :])                    # h0 == 0, so skip the matmul
    for t in range(1, T):
        h = jnp.tanh(xw[:, t, :]
                     + jnp.dot(h, whh, preferred_element_type=jnp.float32))

    o = jnp.maximum(h, 0.0)                      # relu(out[:, -1, :])

    # fc1 + relu  (dropout1 == identity in eval)
    o = jnp.maximum(
        jnp.dot(o, w1_ref[...], preferred_element_type=jnp.float32) + b1_ref[...], 0.0)
    # fc2 + relu
    o = jnp.maximum(
        jnp.dot(o, w2_ref[...], preferred_element_type=jnp.float32) + b2_ref[...], 0.0)
    # fc3 + relu  (dropout2 == identity in eval)
    o = jnp.maximum(
        jnp.dot(o, w3_ref[...], preferred_element_type=jnp.float32) + b3_ref[...], 0.0)
    # fc4 + relu
    o = jnp.maximum(
        jnp.dot(o, w4_ref[...], preferred_element_type=jnp.float32) + b4_ref[...], 0.0)
    # fc5 + relu
    o = jnp.maximum(
        jnp.dot(o, w5_ref[...], preferred_element_type=jnp.float32) + b5_ref[...], 0.0)

    out_ref[...] = o.astype(out_ref.dtype)


def rnn_regressor6_forward(x, params):
    """x: (B, T, D_in) batch-first float32. Returns (B, output_dim) float32."""
    B, T, D_in = x.shape
    out_dim = params["w5"].shape[1]

    # Pure metadata reshape — no transpose / copy of the full input tensor.
    x_flat = x.reshape(B * T, D_in).astype(jnp.float32)
    # The two RNN biases always add; fold them once on the host side.
    b_rnn = (params["bih"] + params["bhh"]).astype(jnp.float32)

    args = (
        x_flat,
        params["wih"], params["whh"], b_rnn,
        params["w1"], params["b1"],
        params["w2"], params["b2"],
        params["w3"], params["b3"],
        params["w4"], params["b4"],
        params["w5"], params["b5"],
    )

    vmem_spec = pl.BlockSpec(memory_space=pltpu.MemorySpace.VMEM)
    kernel = functools.partial(_rnn_regressor6_kernel, batch=B, seq_len=T)
    out = pl.pallas_call(
        kernel,
        out_shape=jax.ShapeDtypeStruct((B, out_dim), jnp.float32),
        in_specs=[vmem_spec] * len(args),
        out_specs=vmem_spec,
    )(*args)
    return out


def init_params(key, input_dim, hidden_dim1, hidden_dim2, output_dim):
    """Deterministic parameter init mirroring the shapes of rnnRegressor6.

    RNN weights: uniform(-1/sqrt(H1), 1/sqrt(H1)) (PyTorch RNN default).
    Linear weights: Xavier-uniform, zero biases (module's initialize_weights).
    All weight matrices stored pre-transposed as (in, out).
    """
    keys = jax.random.split(key, 16)

    def xavier(k, fan_in, fan_out):
        limit = jnp.sqrt(6.0 / (fan_in + fan_out))
        # (in, out) layout == transpose of PyTorch's (out, in) xavier matrix
        return jax.random.uniform(k, (fan_in, fan_out), jnp.float32, -limit, limit)

    krnn = 1.0 / jnp.sqrt(jnp.float32(hidden_dim1))
    params = {
        "wih": jax.random.uniform(keys[0], (input_dim, hidden_dim1), jnp.float32, -krnn, krnn),
        "whh": jax.random.uniform(keys[1], (hidden_dim1, hidden_dim1), jnp.float32, -krnn, krnn),
        "bih": jax.random.uniform(keys[2], (1, hidden_dim1), jnp.float32, -krnn, krnn),
        "bhh": jax.random.uniform(keys[3], (1, hidden_dim1), jnp.float32, -krnn, krnn),
        "w1": xavier(keys[4], hidden_dim1, hidden_dim1),
        "b1": jnp.zeros((1, hidden_dim1), jnp.float32),
        "w2": xavier(keys[5], hidden_dim1, hidden_dim1),
        "b2": jnp.zeros((1, hidden_dim1), jnp.float32),
        "w3": xavier(keys[6], hidden_dim1, hidden_dim2),
        "b3": jnp.zeros((1, hidden_dim2), jnp.float32),
        "w4": xavier(keys[7], hidden_dim2, hidden_dim2),
        "b4": jnp.zeros((1, hidden_dim2), jnp.float32),
        "w5": xavier(keys[8], hidden_dim2, output_dim),
        "b5": jnp.zeros((1, output_dim), jnp.float32),
    }
    return params


def reference_forward(x, params):
    """Pure-JAX reference of the same forward pass, for a sanity check."""
    B, T, _ = x.shape
    h = jnp.zeros((B, params["whh"].shape[0]), jnp.float32)
    for t in range(T):
        h = jnp.tanh(x[:, t, :] @ params["wih"] + h @ params["whh"]
                     + params["bih"] + params["bhh"])
    o = jax.nn.relu(h)
    o = jax.nn.relu(o @ params["w1"] + params["b1"])
    o = jax.nn.relu(o @ params["w2"] + params["b2"])
    o = jax.nn.relu(o @ params["w3"] + params["b3"])
    o = jax.nn.relu(o @ params["w4"] + params["b4"])
    o = jax.nn.relu(o @ params["w5"] + params["b5"])
    return o


if __name__ == "__main__":
    # Small shapes consistent with the module's forward:
    # x: (batch=4, seq=8, input_dim=16); hidden_dim1=32, hidden_dim2=16, output_dim=4
    B, T, D_IN = 4, 8, 16
    H1, H2, OUT = 32, 16, 4

    key = jax.random.PRNGKey(0)
    kx, kp = jax.random.split(key)
    x = jax.random.normal(kx, (B, T, D_IN), jnp.float32)
    params = init_params(kp, D_IN, H1, H2, OUT)

    y = rnn_regressor6_forward(x, params)
    y = jax.block_until_ready(y)

    y_ref = jax.block_until_ready(reference_forward(x, params))
    assert y.shape == (B, OUT)
    assert jnp.allclose(y, y_ref, atol=1e-5, rtol=1e-5), "mismatch vs pure-JAX reference"

    print("KERNEL_OK")
</pallas_src>

<mosaic_0001>
module attributes {stable_mosaic.version = 11 : i64} {
  func.func @_rnn_regressor6_kernel(%arg0: memref<32x16xf32, #tpu.memory_space<vmem>>, %arg1: memref<16x32xf32, #tpu.memory_space<vmem>>, %arg2: memref<32x32xf32, #tpu.memory_space<vmem>>, %arg3: memref<1x32xf32, #tpu.memory_space<vmem>>, %arg4: memref<32x32xf32, #tpu.memory_space<vmem>>, %arg5: memref<1x32xf32, #tpu.memory_space<vmem>>, %arg6: memref<32x32xf32, #tpu.memory_space<vmem>>, %arg7: memref<1x32xf32, #tpu.memory_space<vmem>>, %arg8: memref<32x16xf32, #tpu.memory_space<vmem>>, %arg9: memref<1x16xf32, #tpu.memory_space<vmem>>, %arg10: memref<16x16xf32, #tpu.memory_space<vmem>>, %arg11: memref<1x16xf32, #tpu.memory_space<vmem>>, %arg12: memref<16x4xf32, #tpu.memory_space<vmem>>, %arg13: memref<1x4xf32, #tpu.memory_space<vmem>>, %arg14: memref<4x4xf32, #tpu.memory_space<vmem>>) attributes {dimension_semantics = [], scalar_prefetch = 0 : i64, scratch_operands = 0 : i64, tpu.core_type = #tpu.core_type<tc>} {
    %c0 = arith.constant 0 : index
    %c0_0 = arith.constant 0 : index
    %0 = vector.load %arg2[%c0, %c0_0] : memref<32x32xf32, #tpu.memory_space<vmem>>, vector<32x32xf32>
    %c0_1 = arith.constant 0 : index
    %c0_2 = arith.constant 0 : index
    %1 = vector.load %arg0[%c0_1, %c0_2] : memref<32x16xf32, #tpu.memory_space<vmem>>, vector<32x16xf32>
    %c0_3 = arith.constant 0 : index
    %c0_4 = arith.constant 0 : index
    %2 = vector.load %arg1[%c0_3, %c0_4] : memref<16x32xf32, #tpu.memory_space<vmem>>, vector<16x32xf32>
    %cst = arith.constant dense<0.000000e+00> : vector<32x32xf32>
    %3 = tpu.matmul %1, %2, %cst {dimension_numbers = #tpu.dot_dimension_numbers<[1], [0], [0], [1], [0, 0, 1, 1], [], []>} : vector<32x16xf32>, vector<16x32xf32>, vector<32x32xf32> -> vector<32x32xf32>
    %c0_5 = arith.constant 0 : index
    %c0_6 = arith.constant 0 : index
    %4 = vector.load %arg3[%c0_5, %c0_6] : memref<1x32xf32, #tpu.memory_space<vmem>>, vector<1x32xf32>
    %5 = vector.broadcast %4 : vector<1x32xf32> to vector<32x32xf32>
    %6 = arith.addf %3, %5 : vector<32x32xf32>
    %7 = vector.shape_cast %6 : vector<32x32xf32> to vector<4x8x32xf32>
    %8 = vector.extract_strided_slice %7 {offsets = [0, 0, 0], sizes = [4, 1, 32], strides = [1, 1, 1]} : vector<4x8x32xf32> to vector<4x1x32xf32>
    %9 = vector.shape_cast %8 : vector<4x1x32xf32> to vector<4x32xf32>
    %10 = math.tanh %9 : vector<4x32xf32>
    %11 = vector.extract_strided_slice %7 {offsets = [0, 1, 0], sizes = [4, 1, 32], strides = [1, 1, 1]} : vector<4x8x32xf32> to vector<4x1x32xf32>
    %12 = vector.shape_cast %11 : vector<4x1x32xf32> to vector<4x32xf32>
    %cst_7 = arith.constant dense<0.000000e+00> : vector<4x32xf32>
    %13 = tpu.matmul %10, %0, %cst_7 {dimension_numbers = #tpu.dot_dimension_numbers<[1], [0], [0], [1], [0, 0, 1, 1], [], []>} : vector<4x32xf32>, vector<32x32xf32>, vector<4x32xf32> -> vector<4x32xf32>
    %14 = arith.addf %12, %13 : vector<4x32xf32>
    %15 = math.tanh %14 : vector<4x32xf32>
    %16 = vector.extract_strided_slice %7 {offsets = [0, 2, 0], sizes = [4, 1, 32], strides = [1, 1, 1]} : vector<4x8x32xf32> to vector<4x1x32xf32>
    %17 = vector.shape_cast %16 : vector<4x1x32xf32> to vector<4x32xf32>
    %cst_8 = arith.constant dense<0.000000e+00> : vector<4x32xf32>
    %18 = tpu.matmul %15, %0, %cst_8 {dimension_numbers = #tpu.dot_dimension_numbers<[1], [0], [0], [1], [0, 0, 1, 1], [], []>} : vector<4x32xf32>, vector<32x32xf32>, vector<4x32xf32> -> vector<4x32xf32>
    %19 = arith.addf %17, %18 : vector<4x32xf32>
    %20 = math.tanh %19 : vector<4x32xf32>
    %21 = vector.extract_strided_slice %7 {offsets = [0, 3, 0], sizes = [4, 1, 32], strides = [1, 1, 1]} : vector<4x8x32xf32> to vector<4x1x32xf32>
    %22 = vector.shape_cast %21 : vector<4x1x32xf32> to vector<4x32xf32>
    %cst_9 = arith.constant dense<0.000000e+00> : vector<4x32xf32>
    %23 = tpu.matmul %20, %0, %cst_9 {dimension_numbers = #tpu.dot_dimension_numbers<[1], [0], [0], [1], [0, 0, 1, 1], [], []>} : vector<4x32xf32>, vector<32x32xf32>, vector<4x32xf32> -> vector<4x32xf32>
    %24 = arith.addf %22, %23 : vector<4x32xf32>
    %25 = math.tanh %24 : vector<4x32xf32>
    %26 = vector.extract_strided_slice %7 {offsets = [0, 4, 0], sizes = [4, 1, 32], strides = [1, 1, 1]} : vector<4x8x32xf32> to vector<4x1x32xf32>
    %27 = vector.shape_cast %26 : vector<4x1x32xf32> to vector<4x32xf32>
    %cst_10 = arith.constant dense<0.000000e+00> : vector<4x32xf32>
    %28 = tpu.matmul %25, %0, %cst_10 {dimension_numbers = #tpu.dot_dimension_numbers<[1], [0], [0], [1], [0, 0, 1, 1], [], []>} : vector<4x32xf32>, vector<32x32xf32>, vector<4x32xf32> -> vector<4x32xf32>
    %29 = arith.addf %27, %28 : vector<4x32xf32>
    %30 = math.tanh %29 : vector<4x32xf32>
    %31 = vector.extract_strided_slice %7 {offsets = [0, 5, 0], sizes = [4, 1, 32], strides = [1, 1, 1]} : vector<4x8x32xf32> to vector<4x1x32xf32>
    %32 = vector.shape_cast %31 : vector<4x1x32xf32> to vector<4x32xf32>
    %cst_11 = arith.constant dense<0.000000e+00> : vector<4x32xf32>
    %33 = tpu.matmul %30, %0, %cst_11 {dimension_numbers = #tpu.dot_dimension_numbers<[1], [0], [0], [1], [0, 0, 1, 1], [], []>} : vector<4x32xf32>, vector<32x32xf32>, vector<4x32xf32> -> vector<4x32xf32>
    %34 = arith.addf %32, %33 : vector<4x32xf32>
    %35 = math.tanh %34 : vector<4x32xf32>
    %36 = vector.extract_strided_slice %7 {offsets = [0, 6, 0], sizes = [4, 1, 32], strides = [1, 1, 1]} : vector<4x8x32xf32> to vector<4x1x32xf32>
    %37 = vector.shape_cast %36 : vector<4x1x32xf32> to vector<4x32xf32>
    %cst_12 = arith.constant dense<0.000000e+00> : vector<4x32xf32>
    %38 = tpu.matmul %35, %0, %cst_12 {dimension_numbers = #tpu.dot_dimension_numbers<[1], [0], [0], [1], [0, 0, 1, 1], [], []>} : vector<4x32xf32>, vector<32x32xf32>, vector<4x32xf32> -> vector<4x32xf32>
    %39 = arith.addf %37, %38 : vector<4x32xf32>
    %40 = math.tanh %39 : vector<4x32xf32>
    %41 = vector.extract_strided_slice %7 {offsets = [0, 7, 0], sizes = [4, 1, 32], strides = [1, 1, 1]} : vector<4x8x32xf32> to vector<4x1x32xf32>
    %42 = vector.shape_cast %41 : vector<4x1x32xf32> to vector<4x32xf32>
    %cst_13 = arith.constant dense<0.000000e+00> : vector<4x32xf32>
    %43 = tpu.matmul %40, %0, %cst_13 {dimension_numbers = #tpu.dot_dimension_numbers<[1], [0], [0], [1], [0, 0, 1, 1], [], []>} : vector<4x32xf32>, vector<32x32xf32>, vector<4x32xf32> -> vector<4x32xf32>
    %44 = arith.addf %42, %43 : vector<4x32xf32>
    %45 = math.tanh %44 : vector<4x32xf32>
    %cst_14 = arith.constant 0.000000e+00 : f32
    %46 = vector.broadcast %cst_14 : f32 to vector<4x32xf32>
    %47 = arith.maximumf %45, %46 : vector<4x32xf32>
    %c0_15 = arith.constant 0 : index
    %c0_16 = arith.constant 0 : index
    %48 = vector.load %arg4[%c0_15, %c0_16] : memref<32x32xf32, #tpu.memory_space<vmem>>, vector<32x32xf32>
    %cst_17 = arith.constant dense<0.000000e+00> : vector<4x32xf32>
    %49 = tpu.matmul %47, %48, %cst_17 {dimension_numbers = #tpu.dot_dimension_numbers<[1], [0], [0], [1], [0, 0, 1, 1], [], []>} : vector<4x32xf32>, vector<32x32xf32>, vector<4x32xf32> -> vector<4x32xf32>
    %c0_18 = arith.constant 0 : index
    %c0_19 = arith.constant 0 : index
    %50 = vector.load %arg5[%c0_18, %c0_19] : memref<1x32xf32, #tpu.memory_space<vmem>>, vector<1x32xf32>
    %51 = vector.broadcast %50 : vector<1x32xf32> to vector<4x32xf32>
    %52 = arith.addf %49, %51 : vector<4x32xf32>
    %cst_20 = arith.constant 0.000000e+00 : f32
    %53 = vector.broadcast %cst_20 : f32 to vector<4x32xf32>
    %54 = arith.maximumf %52, %53 : vector<4x32xf32>
    %c0_21 = arith.constant 0 : index
    %c0_22 = arith.constant 0 : index
    %55 = vector.load %arg6[%c0_21, %c0_22] : memref<32x32xf32, #tpu.memory_space<vmem>>, vector<32x32xf32>
    %cst_23 = arith.constant dense<0.000000e+00> : vector<4x32xf32>
    %56 = tpu.matmul %54, %55, %cst_23 {dimension_numbers = #tpu.dot_dimension_numbers<[1], [0], [0], [1], [0, 0, 1, 1], [], []>} : vector<4x32xf32>, vector<32x32xf32>, vector<4x32xf32> -> vector<4x32xf32>
    %c0_24 = arith.constant 0 : index
    %c0_25 = arith.constant 0 : index
    %57 = vector.load %arg7[%c0_24, %c0_25] : memref<1x32xf32, #tpu.memory_space<vmem>>, vector<1x32xf32>
    %58 = vector.broadcast %57 : vector<1x32xf32> to vector<4x32xf32>
    %59 = arith.addf %56, %58 : vector<4x32xf32>
    %cst_26 = arith.constant 0.000000e+00 : f32
    %60 = vector.broadcast %cst_26 : f32 to vector<4x32xf32>
    %61 = arith.maximumf %59, %60 : vector<4x32xf32>
    %c0_27 = arith.constant 0 : index
    %c0_28 = arith.constant 0 : index
    %62 = vector.load %arg8[%c0_27, %c0_28] : memref<32x16xf32, #tpu.memory_space<vmem>>, vector<32x16xf32>
    %cst_29 = arith.constant dense<0.000000e+00> : vector<4x16xf32>
    %63 = tpu.matmul %61, %62, %cst_29 {dimension_numbers = #tpu.dot_dimension_numbers<[1], [0], [0], [1], [0, 0, 1, 1], [], []>} : vector<4x32xf32>, vector<32x16xf32>, vector<4x16xf32> -> vector<4x16xf32>
    %c0_30 = arith.constant 0 : index
    %c0_31 = arith.constant 0 : index
    %64 = vector.load %arg9[%c0_30, %c0_31] : memref<1x16xf32, #tpu.memory_space<vmem>>, vector<1x16xf32>
    %65 = vector.broadcast %64 : vector<1x16xf32> to vector<4x16xf32>
    %66 = arith.addf %63, %65 : vector<4x16xf32>
    %cst_32 = arith.constant 0.000000e+00 : f32
    %67 = vector.broadcast %cst_32 : f32 to vector<4x16xf32>
    %68 = arith.maximumf %66, %67 : vector<4x16xf32>
    %c0_33 = arith.constant 0 : index
    %c0_34 = arith.constant 0 : index
    %69 = vector.load %arg10[%c0_33, %c0_34] : memref<16x16xf32, #tpu.memory_space<vmem>>, vector<16x16xf32>
    %cst_35 = arith.constant dense<0.000000e+00> : vector<4x16xf32>
    %70 = tpu.matmul %68, %69, %cst_35 {dimension_numbers = #tpu.dot_dimension_numbers<[1], [0], [0], [1], [0, 0, 1, 1], [], []>} : vector<4x16xf32>, vector<16x16xf32>, vector<4x16xf32> -> vector<4x16xf32>
    %c0_36 = arith.constant 0 : index
    %c0_37 = arith.constant 0 : index
    %71 = vector.load %arg11[%c0_36, %c0_37] : memref<1x16xf32, #tpu.memory_space<vmem>>, vector<1x16xf32>
    %72 = vector.broadcast %71 : vector<1x16xf32> to vector<4x16xf32>
    %73 = arith.addf %70, %72 : vector<4x16xf32>
    %cst_38 = arith.constant 0.000000e+00 : f32
    %74 = vector.broadcast %cst_38 : f32 to vector<4x16xf32>
    %75 = arith.maximumf %73, %74 : vector<4x16xf32>
    %c0_39 = arith.constant 0 : index
    %c0_40 = arith.constant 0 : index
    %76 = vector.load %arg12[%c0_39, %c0_40] : memref<16x4xf32, #tpu.memory_space<vmem>>, vector<16x4xf32>
    %cst_41 = arith.constant dense<0.000000e+00> : vector<4x4xf32>
    %77 = tpu.matmul %75, %76, %cst_41 {dimension_numbers = #tpu.dot_dimension_numbers<[1], [0], [0], [1], [0, 0, 1, 1], [], []>} : vector<4x16xf32>, vector<16x4xf32>, vector<4x4xf32> -> vector<4x4xf32>
    %c0_42 = arith.constant 0 : index
    %c0_43 = arith.constant 0 : index
    %78 = vector.load %arg13[%c0_42, %c0_43] : memref<1x4xf32, #tpu.memory_space<vmem>>, vector<1x4xf32>
    %79 = vector.broadcast %78 : vector<1x4xf32> to vector<4x4xf32>
    %80 = arith.addf %77, %79 : vector<4x4xf32>
    %cst_44 = arith.constant 0.000000e+00 : f32
    %81 = vector.broadcast %cst_44 : f32 to vector<4x4xf32>
    %82 = arith.maximumf %80, %81 : vector<4x4xf32>
    %c0_45 = arith.constant 0 : index
    %c0_46 = arith.constant 0 : index
    %83 = vector.load %arg14[%c0_45, %c0_46] : memref<4x4xf32, #tpu.memory_space<vmem>>, vector<4x4xf32>
    tpu.vector_store %arg14[%c0_45, %c0_46], %82 {strides = array<i32>} : memref<4x4xf32, #tpu.memory_space<vmem>>, vector<4x4xf32>,
    return
  }
}

</mosaic_0001>

<llo_original>
// kernel: tpu_custom_call.1
$region0: #{tpu_custom_call.1}
  #allocation0 [shape = 'u32[]', space=smem, size = 0x4, offset = 0x4, fixed_abs, tag = 'smem constant byte address 0x4 - core index']
  #allocation1 [shape = 'u32[72,128]{1,0:T(1,128)}', space=vmem, size = 0x9000, scoped, tag = 'internal scratch']
  %s0 = inlined_call_operand.vmem [shape: f32[32,16], index: 0, kind: input, shape index: {}]
  %s1 = inlined_call_operand.vmem [shape: f32[16,32], index: 1, kind: input, shape index: {}]
  %s2 = inlined_call_operand.vmem [shape: f32[32,32], index: 2, kind: input, shape index: {}]
  %s3 = inlined_call_operand.vmem [shape: f32[1,32], index: 3, kind: input, shape index: {}]
  %s4 = inlined_call_operand.vmem [shape: f32[32,32], index: 4, kind: input, shape index: {}]
  %s5 = inlined_call_operand.vmem [shape: f32[1,32], index: 5, kind: input, shape index: {}]
  %s6 = inlined_call_operand.hbm [shape: f32[32,32], index: 6, kind: input, shape index: {}]
  %s7 = inlined_call_operand.vmem [shape: f32[1,32], index: 7, kind: input, shape index: {}]
  %s8 = inlined_call_operand.vmem [shape: f32[32,16], index: 8, kind: input, shape index: {}]
  %s9 = inlined_call_operand.vmem [shape: f32[1,16], index: 9, kind: input, shape index: {}]
  %s10 = inlined_call_operand.hbm [shape: f32[16,16], index: 10, kind: input, shape index: {}]
  %s11 = inlined_call_operand.vmem [shape: f32[1,16], index: 11, kind: input, shape index: {}]
  %s12 = inlined_call_operand.vmem [shape: f32[16,4], index: 12, kind: input, shape index: {}]
  %s13 = inlined_call_operand.vmem [shape: f32[1,4], index: 13, kind: input, shape index: {}]
  %s14 = inlined_call_operand.hbm [shape: f32[4,4], index: 14, kind: output, shape index: {}]
  %s15 = sld [smem:[#allocation0]]
  $region74: #{tpu_custom_call.1} parent=0
    _
  %s17 = ssub.s32 1, %s15
  %s18 = scalar_select 0, %s17, %s15
  $region1: #{tpu_custom_call.1} parent=0
    #allocation2 [shape = 'u8[16384]{0}', space=vmem, size = 0x4000, scoped, tag = 'input window, operand 6, single buffered']
    #allocation3 [shape = 's32[1]{0}', space=sflag, size = 0x4, scoped, tag = 'scoped memory for tpu_custom_call.1']
    #allocation4 [shape = 's32[1]{0}', space=sflag, size = 0x4, scoped, tag = 'scoped memory for tpu_custom_call.1']
    #allocation5 [shape = 'u8[8192]{0}', space=vmem, size = 0x2000, scoped, tag = 'input window, operand 10, single buffered']
    #allocation6 [shape = 's32[1]{0}', space=sflag, size = 0x4, scoped, tag = 'scoped memory for tpu_custom_call.1']
    #allocation7 [shape = 'u8[2048]{0}', space=vmem, size = 0x800, scoped, tag = 'output window, operand 0, single buffered']
    %19 = vsyncpa [#allocation3], 0
    %20 = vsyncpa [#allocation6], 0
    %21 = vsyncpa [#allocation4], 0
    // Predicated region
    $region2: #{tpu_custom_call.1} parent=1 // pred_check
      _
    $region3: #{tpu_custom_call.1} parent=1 // pred_check_branch
      %23 = sbr.rel (0) target = $region5
    $region4: #{tpu_custom_call.1} parent=1 // pred_region
      _
    $region5: #{tpu_custom_call.1} parent=1 // pred_fallthru
      _
    // Predicated region
    $region6: #{tpu_custom_call.1} parent=1 // pred_check
      _
    $region7: #{tpu_custom_call.1} parent=1 // pred_check_branch
      %25 = sbr.rel (0) target = $region9
    $region8: #{tpu_custom_call.1} parent=1 // pred_region
      _
    $region9: #{tpu_custom_call.1} parent=1 // pred_fallthru
      _
    // Predicated region
    $region10: #{tpu_custom_call.1} parent=1 // pred_check
      _
    $region11: #{tpu_custom_call.1} parent=1 // pred_check_branch
      %27 = sbr.rel (0) target = $region13
    $region12: #{tpu_custom_call.1} parent=1 // pred_region
      _
    $region13: #{tpu_custom_call.1} parent=1 // pred_fallthru
      _
    // Predicated region
    $region14: #{tpu_custom_call.1} parent=1 // pred_check
      _
    $region15: #{tpu_custom_call.1} parent=1 // pred_check_branch
      %29 = sbr.rel (0) target = $region17
    $region16: #{tpu_custom_call.1} parent=1 // pred_region
      _
    $region17: #{tpu_custom_call.1} parent=1 // pred_fallthru
      _
    // Predicated region
    $region18: #{tpu_custom_call.1} parent=1 // pred_check
      _
    $region19: #{tpu_custom_call.1} parent=1 // pred_check_branch
      %31 = sbr.rel (0) target = $region21
    $region20: #{tpu_custom_call.1} parent=1 // pred_region
      _
    $region21: #{tpu_custom_call.1} parent=1 // pred_fallthru
      _
    // Predicated region
    $region22: #{tpu_custom_call.1} parent=1 // pred_check
      _
    $region23: #{tpu_custom_call.1} parent=1 // pred_check_branch
      %33 = sbr.rel (0) target = $region25
    $region24: #{tpu_custom_call.1} parent=1 // pred_region
      _
    $region25: #{tpu_custom_call.1} parent=1 // pred_fallthru
      _
    // Predicated region
    $region26: #{tpu_custom_call.1} parent=1 // pred_check
      _
    $region27: #{tpu_custom_call.1} parent=1 // pred_check_branch
      %35 = sbr.rel (0) target = $region29
    $region28: #{tpu_custom_call.1} parent=1 // pred_region
      %37 = vsyncadd [#allocation3], 0
      %s38 = sshll.u32 %s6, 4
      %s39 = int_to_ptr.hbm [resolvable:$true] %s38
      %s40 = sshll.u32 [#allocation2], 4
      %s41 = int_to_ptr.vmem [resolvable:$true] %s40
      %46 = dma.hbm_to_vmem [thread:$0]  %s39, 512, %s41, [#allocation3], 128, 128, 8
    $region29: #{tpu_custom_call.1} parent=1 // pred_fallthru
      _
    // Predicated region
    $region30: #{tpu_custom_call.1} parent=1 // pred_check
      _
    $region31: #{tpu_custom_call.1} parent=1 // pred_check_branch
      %48 = sbr.rel (0) target = $region33
    $region32: #{tpu_custom_call.1} parent=1 // pred_region
      _
    $region33: #{tpu_custom_call.1} parent=1 // pred_fallthru
      _
    // Predicated region
    $region34: #{tpu_custom_call.1} parent=1 // pred_check
      _
    $region35: #{tpu_custom_call.1} parent=1 // pred_check_branch
      %50 = sbr.rel (0) target = $region37
    $region36: #{tpu_custom_call.1} parent=1 // pred_region
      _
    $region37: #{tpu_custom_call.1} parent=1 // pred_fallthru
      _
    // Predicated region
    $region38: #{tpu_custom_call.1} parent=1 // pred_check
      _
    $region39: #{tpu_custom_call.1} parent=1 // pred_check_branch
      %52 = sbr.rel (0) target = $region41
    $region40: #{tpu_custom_call.1} parent=1 // pred_region
      _
    $region41: #{tpu_custom_call.1} parent=1 // pred_fallthru
      _
    // Predicated region
    $region42: #{tpu_custom_call.1} parent=1 // pred_check
      _
    $region43: #{tpu_custom_call.1} parent=1 // pred_check_branch
      %54 = sbr.rel (0) target = $region45
    $region44: #{tpu_custom_call.1} parent=1 // pred_region
      %56 = vsyncadd [#allocation6], 0
      %s57 = sshll.u32 %s10, 4
      %s58 = int_to_ptr.hbm [resolvable:$true] %s57
      %s59 = sshll.u32 [#allocation5], 4
      %s60 = int_to_ptr.vmem [resolvable:$true] %s59
      %65 = dma.hbm_to_vmem [thread:$0]  %s58, 256, %s60, [#allocation6], 128, 128, 8
    $region45: #{tpu_custom_call.1} parent=1 // pred_fallthru
      _
    // Predicated region
    $region46: #{tpu_custom_call.1} parent=1 // pred_check
      _
    $region47: #{tpu_custom_call.1} parent=1 // pred_check_branch
      %67 = sbr.rel (0) target = $region49
    $region48: #{tpu_custom_call.1} parent=1 // pred_region
      _
    $region49: #{tpu_custom_call.1} parent=1 // pred_fallthru
      _
    // Predicated region
    $region50: #{tpu_custom_call.1} parent=1 // pred_check
      _
    $region51: #{tpu_custom_call.1} parent=1 // pred_check_branch
      %69 = sbr.rel (0) target = $region53
    $region52: #{tpu_custom_call.1} parent=1 // pred_region
      _
    $region53: #{tpu_custom_call.1} parent=1 // pred_fallthru
      _
    // Predicated region
    $region54: #{tpu_custom_call.1} parent=1 // pred_check
      _
    $region55: #{tpu_custom_call.1} parent=1 // pred_check_branch
      %71 = sbr.rel (0) target = $region57
    $region56: #{tpu_custom_call.1} parent=1 // pred_region
      _
    $region57: #{tpu_custom_call.1} parent=1 // pred_fallthru
      _
    // Predicated region
    $region58: #{tpu_custom_call.1} parent=1 // pred_check
      _
    $region59: #{tpu_custom_call.1} parent=1 // pred_check_branch
      %73 = sbr.rel (0) target = $region61
    $region60: #{tpu_custom_call.1} parent=1 // pred_region
      %75 = dma.done [#allocation3], 512
    $region61: #{tpu_custom_call.1} parent=1 // pred_fallthru
      _
    // Predicated region
    $region62: #{tpu_custom_call.1} parent=1 // pred_check
      _
    $region63: #{tpu_custom_call.1} parent=1 // pred_check_branch
      %77 = sbr.rel (0) target = $region65
    $region64: #{tpu_custom_call.1} parent=1 // pred_region
      %79 = dma.done [#allocation6], 256
    $region65: #{tpu_custom_call.1} parent=1 // pred_fallthru
      _
    %v80 = vld [vmem:[%s2] sm:$0xff]
    %v81 = vld [vmem:[%s2 + $0x8] sm:$0xff]
    %v82 = vld [vmem:[%s2 + $0x10] sm:$0xff]
    %v83 = vld [vmem:[%s2 + $0x18] sm:$0xff]
    %v84 = vld [vmem:[%s0] sm:$0xff]
    %v85 = vld [vmem:[%s0 + $0x8] sm:$0xff]
    %v86 = vld [vmem:[%s0 + $0x10] sm:$0xff]
    %v87 = vld [vmem:[%s0 + $0x18] sm:$0xff]
    %v88 = vld [vmem:[%s1] sm:$0xff]
    %v89 = vld [vmem:[%s1 + $0x8] sm:$0xff]
    %v90 = vld [vmem:[%s3] sm:$0x1]
    %v92 = vperm.slane %v90, 0
    %vm94 = vcmask 130048
    %v96 = vsel %vm94, %v84, 0
    %v99 = vsel %vm94, %v85, 0
    %v102 = vsel %vm94, %v86, 0
    %v105 = vsel %vm94, %v87, 0
    %107 = vmatpush.msra.mxu0 0.0
    %108 = vmatpush.msra.mxu0 0.0
    %109 = vmatpush.msra.mxu0 0.0
    %110 = vmatpush.msra.mxu0 0.0
    %111 = vmatpush.msra.mxu0 0.0
    %112 = vmatpush.msra.mxu0 0.0
    %113 = vmatpush.msra.mxu0 0.0
    %114 = vmatpush.msra.mxu0 0.0
    %115 = vmatpush.msra.mxu0 0.0
    %116 = vmatpush.msra.mxu0 0.0
    %117 = vmatpush.msra.mxu0 0.0
    %118 = vmatpush.msra.mxu0 0.0
    %119 = vmatpush.msra.mxu0 0.0
    %120 = vmatpush.msra.mxu0 0.0
    %121 = vmatpush.msra.mxu0 %v89
    %122 = vmatpush.msra.mxu0 %v88
    %123 = vmatmul.f32.gmra.mxu0 %v96
    %v124 = vpop.f32.mrf.mxu0
    %v125 = vadd.f32 %v92, %v124
    %126 = vmatmul.f32.gmra.mxu0 %v99
    %v127 = vpop.f32.mrf.mxu0
    %v128 = vadd.f32 %v92, %v127
    %129 = vmatmul.f32.gmra.mxu0 %v102
    %v130 = vpop.f32.mrf.mxu0
    %v131 = vadd.f32 %v92, %v130
    %132 = vmatmul.f32.gmra.mxu0 %v105
    %v133 = vpop.f32.mrf.mxu0
    %v134 = vadd.f32 %v92, %v133
    %135 = vdwg.mxu0
    %v136 = vtanh.pop %v125
    %v137 = vtanh.pop %v128
    %v138 = vtanh.pop %v131
    %v139 = vtanh.pop %v134
    %v144 = vrot.slane %v137, 7
    %vm145 = vcmask 1041409
    %v146 = vsel %vm145, %v144, %v136
    %v147 = vrot.slane %v138, 6
    %vm148 = vcmask 1042434
    %v149 = vsel %vm148, %v147, %v146
    %v150 = vrot.slane %v139, 5
    %vm151 = vcmask 1043459
    %v152 = vsel %vm151, %v150, %v149
    %vm153 = vcmask 261120
    %v154 = vsel %vm153, %v152, 0
    %156 = vmatpush.msra.mxu0 0.0
    %157 = vmatpush.msra.mxu0 0.0
    %158 = vmatpush.msra.mxu0 0.0
    %159 = vmatpush.msra.mxu0 0.0
    %160 = vmatpush.msra.mxu0 0.0
    %161 = vmatpush.msra.mxu0 0.0
    %162 = vmatpush.msra.mxu0 0.0
    %163 = vmatpush.msra.mxu0 0.0
    %164 = vmatpush.msra.mxu0 0.0
    %165 = vmatpush.msra.mxu0 0.0
    %166 = vmatpush.msra.mxu0 0.0
    %167 = vmatpush.msra.mxu0 0.0
    %168 = vmatpush.msra.mxu0 %v83
    %169 = vmatpush.msra.mxu0 %v82
    %170 = vmatpush.msra.mxu0 %v81
    %171 = vmatpush.msra.mxu0 %v80
    %172 = vmatmul.f32.gmra.mxu0 %v154
    %v173 = vpop.f32.mrf.mxu0
    %v174 = vadd.f32 0.0, %v173
    %175 = vdwg.mxu0
    %v177 = vrot.slane %v174, 7
    %v178 = vrot.slane %v174, 1
    %v179 = vrot.slane %v174, 2
    %v184 = vadd.f32 %v125, %v177
    %v185 = vadd.f32 %v128, %v174
    %v186 = vadd.f32 %v131, %v178
    %v187 = vadd.f32 %v134, %v179
    %v188 = vtanh.pop %v184
    %v189 = vtanh.pop %v185
    %v190 = vtanh.pop %v186
    %v191 = vtanh.pop %v187
    %v196 = vrot.slane %v188, 1
    %v197 = vsel %vm145, %v189, %v196
    %v198 = vrot.slane %v190, 7
    %v199 = vsel %vm148, %v198, %v197
    %v200 = vrot.slane %v191, 6
    %v201 = vsel %vm151, %v200, %v199
    %v202 = vsel %vm153, %v201, 0
    %204 = vmatpush.msra.mxu0 0.0
    %205 = vmatpush.msra.mxu0 0.0
    %206 = vmatpush.msra.mxu0 0.0
    %207 = vmatpush.msra.mxu0 0.0
    %208 = vmatpush.msra.mxu0 0.0
    %209 = vmatpush.msra.mxu0 0.0
    %210 = vmatpush.msra.mxu0 0.0
    %211 = vmatpush.msra.mxu0 0.0
    %212 = vmatpush.msra.mxu0 0.0
    %213 = vmatpush.msra.mxu0 0.0
    %214 = vmatpush.msra.mxu0 0.0
    %215 = vmatpush.msra.mxu0 0.0
    %216 = vmatpush.msra.mxu0 %v83
    %217 = vmatpush.msra.mxu0 %v82
    %218 = vmatpush.msra.mxu0 %v81
    %219 = vmatpush.msra.mxu0 %v80
    %220 = vmatmul.f32.gmra.mxu0 %v202
    %v221 = vpop.f32.mrf.mxu0
    %v222 = vadd.f32 0.0, %v221
    %223 = vdwg.mxu0
    %v225 = vrot.slane %v222, 6
    %v226 = vrot.slane %v222, 7
    %v227 = vrot.slane %v222, 1
    %v232 = vadd.f32 %v125, %v225
    %v233 = vadd.f32 %v128, %v226
    %v234 = vadd.f32 %v131, %v222
    %v235 = vadd.f32 %v134, %v227
    %v236 = vtanh.pop %v232
    %v237 = vtanh.pop %v233
    %v238 = vtanh.pop %v234
    %v239 = vtanh.pop %v235
    %v244 = vrot.slane %v236, 2
    %v245 = vrot.slane %v237, 1
    %v246 = vsel %vm145, %v245, %v244
    %v247 = vsel %vm148, %v238, %v246
    %v248 = vrot.slane %v239, 7
    %v249 = vsel %vm151, %v248, %v247
    %v250 = vsel %vm153, %v249, 0
    %252 = vmatpush.msra.mxu0 0.0
    %253 = vmatpush.msra.mxu0 0.0
    %254 = vmatpush.msra.mxu0 0.0
    %255 = vmatpush.msra.mxu0 0.0
    %256 = vmatpush.msra.mxu0 0.0
    %257 = vmatpush.msra.mxu0 0.0
    %258 = vmatpush.msra.mxu0 0.0
    %259 = vmatpush.msra.mxu0 0.0
    %260 = vmatpush.msra.mxu0 0.0
    %261 = vmatpush.msra.mxu0 0.0
    %262 = vmatpush.msra.mxu0 0.0
    %263 = vmatpush.msra.mxu0 0.0
    %264 = vmatpush.msra.mxu0 %v83
    %265 = vmatpush.msra.mxu0 %v82
    %266 = vmatpush.msra.mxu0 %v81
    %267 = vmatpush.msra.mxu0 %v80
    %268 = vmatmul.f32.gmra.mxu0 %v250
    %v269 = vpop.f32.mrf.mxu0
    %v270 = vadd.f32 0.0, %v269
    %271 = vdwg.mxu0
    %v273 = vrot.slane %v270, 5
    %v274 = vrot.slane %v270, 6
    %v275 = vrot.slane %v270, 7
    %v280 = vadd.f32 %v125, %v273
    %v281 = vadd.f32 %v128, %v274
    %v282 = vadd.f32 %v131, %v275
    %v283 = vadd.f32 %v134, %v270
    %v284 = vtanh.pop %v280
    %v285 = vtanh.pop %v281
    %v286 = vtanh.pop %v282
    %v287 = vtanh.pop %v283
    %v292 = vrot.slane %v284, 3
    %v293 = vrot.slane %v285, 2
    %v294 = vsel %vm145, %v293, %v292
    %v295 = vrot.slane %v286, 1
    %v296 = vsel %vm148, %v295, %v294
    %v297 = vsel %vm151, %v287, %v296
    %v298 = vsel %vm153, %v297, 0
    %300 = vmatpush.msra.mxu0 0.0
    %301 = vmatpush.msra.mxu0 0.0
    %302 = vmatpush.msra.mxu0 0.0
    %303 = vmatpush.msra.mxu0 0.0
    %304 = vmatpush.msra.mxu0 0.0
    %305 = vmatpush.msra.mxu0 0.0
    %306 = vmatpush.msra.mxu0 0.0
    %307 = vmatpush.msra.mxu0 0.0
    %308 = vmatpush.msra.mxu0 0.0
    %309 = vmatpush.msra.mxu0 0.0
    %310 = vmatpush.msra.mxu0 0.0
    %311 = vmatpush.msra.mxu0 0.0
    %312 = vmatpush.msra.mxu0 %v83
    %313 = vmatpush.msra.mxu0 %v82
    %314 = vmatpush.msra.mxu0 %v81
    %315 = vmatpush.msra.mxu0 %v80
    %316 = vmatmul.f32.gmra.mxu0 %v298
    %v317 = vpop.f32.mrf.mxu0
    %v318 = vadd.f32 0.0, %v317
    %319 = vdwg.mxu0
    %v321 = vrot.slane %v318, 4
    %v322 = vrot.slane %v318, 5
    %v323 = vrot.slane %v318, 6
    %v324 = vrot.slane %v318, 7
    %v329 = vadd.f32 %v125, %v321
    %v330 = vadd.f32 %v128, %v322
    %v331 = vadd.f32 %v131, %v323
    %v332 = vadd.f32 %v134, %v324
    %v333 = vtanh.pop %v329
    %v334 = vtanh.pop %v330
    %v335 = vtanh.pop %v331
    %v336 = vtanh.pop %v332
    %v341 = vrot.slane %v333, 4
    %v342 = vrot.slane %v334, 3
    %v343 = vsel %vm145, %v342, %v341
    %v344 = vrot.slane %v335, 2
    %v345 = vsel %vm148, %v344, %v343
    %v346 = vrot.slane %v336, 1
    %v347 = vsel %vm151, %v346, %v345
    %v348 = vsel %vm153, %v347, 0
    %350 = vmatpush.msra.mxu0 0.0
    %351 = vmatpush.msra.mxu0 0.0
    %352 = vmatpush.msra.mxu0 0.0
    %353 = vmatpush.msra.mxu0 0.0
    %354 = vmatpush.msra.mxu0 0.0
    %355 = vmatpush.msra.mxu0 0.0
    %356 = vmatpush.msra.mxu0 0.0
    %357 = vmatpush.msra.mxu0 0.0
    %358 = vmatpush.msra.mxu0 0.0
    %359 = vmatpush.msra.mxu0 0.0
    %360 = vmatpush.msra.mxu0 0.0
    %361 = vmatpush.msra.mxu0 0.0
    %362 = vmatpush.msra.mxu0 %v83
    %363 = vmatpush.msra.mxu0 %v82
    %364 = vmatpush.msra.mxu0 %v81
    %365 = vmatpush.msra.mxu0 %v80
    %366 = vmatmul.f32.gmra.mxu0 %v348
    %v367 = vpop.f32.mrf.mxu0
    %v368 = vadd.f32 0.0, %v367
    %369 = vdwg.mxu0
    %v371 = vrot.slane %v368, 3
    %v372 = vrot.slane %v368, 4
    %v373 = vrot.slane %v368, 5
    %v374 = vrot.slane %v368, 6
    %v379 = vadd.f32 %v125, %v371
    %v380 = vadd.f32 %v128, %v372
    %v381 = vadd.f32 %v131, %v373
    %v382 = vadd.f32 %v134, %v374
    %v383 = vtanh.pop %v379
    %v384 = vtanh.pop %v380
    %v385 = vtanh.pop %v381
    %v386 = vtanh.pop %v382
    %v391 = vrot.slane %v383, 5
    %v392 = vrot.slane %v384, 4
    %v393 = vsel %vm145, %v392, %v391
    %v394 = vrot.slane %v385, 3
    %v395 = vsel %vm148, %v394, %v393
    %v396 = vrot.slane %v386, 2
    %v397 = vsel %vm151, %v396, %v395
    %v398 = vsel %vm153, %v397, 0
    %400 = vmatpush.msra.mxu0 0.0
    %401 = vmatpush.msra.mxu0 0.0
    %402 = vmatpush.msra.mxu0 0.0
    %403 = vmatpush.msra.mxu0 0.0
    %404 = vmatpush.msra.mxu0 0.0
    %405 = vmatpush.msra.mxu0 0.0
    %406 = vmatpush.msra.mxu0 0.0
    %407 = vmatpush.msra.mxu0 0.0
    %408 = vmatpush.msra.mxu0 0.0
    %409 = vmatpush.msra.mxu0 0.0
    %410 = vmatpush.msra.mxu0 0.0
    %411 = vmatpush.msra.mxu0 0.0
    %412 = vmatpush.msra.mxu0 %v83
    %413 = vmatpush.msra.mxu0 %v82
    %414 = vmatpush.msra.mxu0 %v81
    %415 = vmatpush.msra.mxu0 %v80
    %416 = vmatmul.f32.gmra.mxu0 %v398
    %v417 = vpop.f32.mrf.mxu0
    %v418 = vadd.f32 0.0, %v417
    %419 = vdwg.mxu0
    %v421 = vrot.slane %v418, 2
    %v422 = vrot.slane %v418, 3
    %v423 = vrot.slane %v418, 4
    %v424 = vrot.slane %v418, 5
    %v429 = vadd.f32 %v125, %v421
    %v430 = vadd.f32 %v128, %v422
    %v431 = vadd.f32 %v131, %v423
    %v432 = vadd.f32 %v134, %v424
    %v433 = vtanh.pop %v429
    %v434 = vtanh.pop %v430
    %v435 = vtanh.pop %v431
    %v436 = vtanh.pop %v432
    %v441 = vrot.slane %v433, 6
    %v442 = vrot.slane %v434, 5
    %v443 = vsel %vm145, %v442, %v441
    %v444 = vrot.slane %v435, 4
    %v445 = vsel %vm148, %v444, %v443
    %v446 = vrot.slane %v436, 3
    %v447 = vsel %vm151, %v446, %v445
    %v448 = vsel %vm153, %v447, 0
    %450 = vmatpush.msra.mxu0 0.0
    %451 = vmatpush.msra.mxu0 0.0
    %452 = vmatpush.msra.mxu0 0.0
    %453 = vmatpush.msra.mxu0 0.0
    %454 = vmatpush.msra.mxu0 0.0
    %455 = vmatpush.msra.mxu0 0.0
    %456 = vmatpush.msra.mxu0 0.0
    %457 = vmatpush.msra.mxu0 0.0
    %458 = vmatpush.msra.mxu0 0.0
    %459 = vmatpush.msra.mxu0 0.0
    %460 = vmatpush.msra.mxu0 0.0
    %461 = vmatpush.msra.mxu0 0.0
    %462 = vmatpush.msra.mxu0 %v83
    %463 = vmatpush.msra.mxu0 %v82
    %464 = vmatpush.msra.mxu0 %v81
    %465 = vmatpush.msra.mxu0 %v80
    %466 = vmatmul.f32.gmra.mxu0 %v448
    %v467 = vpop.f32.mrf.mxu0
    %v468 = vadd.f32 0.0, %v467
    %469 = vdwg.mxu0
    %v471 = vrot.slane %v468, 1
    %v472 = vrot.slane %v468, 2
    %v473 = vrot.slane %v468, 3
    %v474 = vrot.slane %v468, 4
    %v479 = vadd.f32 %v125, %v471
    %v480 = vadd.f32 %v128, %v472
    %v481 = vadd.f32 %v131, %v473
    %v482 = vadd.f32 %v134, %v474
    %v483 = vtanh.pop %v479
    %v484 = vtanh.pop %v480
    %v485 = vtanh.pop %v481
    %v486 = vtanh.pop %v482
    %v487 = vmax.f32 %v483, 0.0
    %v488 = vmax.f32 %v484, 0.0
    %v489 = vmax.f32 %v485, 0.0
    %v490 = vmax.f32 %v486, 0.0
    %v491 = vld [vmem:[%s4] sm:$0xff]
    %v492 = vld [vmem:[%s4 + $0x8] sm:$0xff]
    %v493 = vld [vmem:[%s4 + $0x10] sm:$0xff]
    %v494 = vld [vmem:[%s4 + $0x18] sm:$0xff]
    %v495 = vld [vmem:[%s5] sm:$0x1]
    %v497 = vperm.slane %v495, 0
    %v503 = vrot.slane %v487, 7
    %v504 = vrot.slane %v488, 6
    %v505 = vsel %vm145, %v504, %v503
    %v506 = vrot.slane %v489, 5
    %v507 = vsel %vm148, %v506, %v505
    %v508 = vrot.slane %v490, 4
    %v509 = vsel %vm151, %v508, %v507
    %v510 = vsel %vm153, %v509, 0
    %512 = vmatpush.msra.mxu0 0.0
    %513 = vmatpush.msra.mxu0 0.0
    %514 = vmatpush.msra.mxu0 0.0
    %515 = vmatpush.msra.mxu0 0.0
    %516 = vmatpush.msra.mxu0 0.0
    %517 = vmatpush.msra.mxu0 0.0
    %518 = vmatpush.msra.mxu0 0.0
    %519 = vmatpush.msra.mxu0 0.0
    %520 = vmatpush.msra.mxu0 0.0
    %521 = vmatpush.msra.mxu0 0.0
    %522 = vmatpush.msra.mxu0 0.0
    %523 = vmatpush.msra.mxu0 0.0
    %524 = vmatpush.msra.mxu0 %v494
    %525 = vmatpush.msra.mxu0 %v493
    %526 = vmatpush.msra.mxu0 %v492
    %527 = vmatpush.msra.mxu0 %v491
    %528 = vmatmul.f32.gmra.mxu0 %v510
    %v529 = vpop.f32.mrf.mxu0
    %v530 = vadd.f32 %v497, %v529
    %531 = vdwg.mxu0
    %v532 = vmax.f32 %v530, 0.0
    %v533 = vld [vmem:[#allocation2] sm:$0xff]
    %v534 = vld [vmem:[#allocation2 + $0x8] sm:$0xff]
    %v535 = vld [vmem:[#allocation2 + $0x10] sm:$0xff]
    %v536 = vld [vmem:[#allocation2 + $0x18] sm:$0xff]
    %v537 = vld [vmem:[%s7] sm:$0x1]
    %v539 = vperm.slane %v537, 0
    %v542 = vsel %vm153, %v532, 0
    %544 = vmatpush.msra.mxu0 0.0
    %545 = vmatpush.msra.mxu0 0.0
    %546 = vmatpush.msra.mxu0 0.0
    %547 = vmatpush.msra.mxu0 0.0
    %548 = vmatpush.msra.mxu0 0.0
    %549 = vmatpush.msra.mxu0 0.0
    %550 = vmatpush.msra.mxu0 0.0
    %551 = vmatpush.msra.mxu0 0.0
    %552 = vmatpush.msra.mxu0 0.0
    %553 = vmatpush.msra.mxu0 0.0
    %554 = vmatpush.msra.mxu0 0.0
    %555 = vmatpush.msra.mxu0 0.0
    %556 = vmatpush.msra.mxu0 %v536
    %557 = vmatpush.msra.mxu0 %v535
    %558 = vmatpush.msra.mxu0 %v534
    %559 = vmatpush.msra.mxu0 %v533
    %560 = vmatmul.f32.gmra.mxu0 %v542
    %v561 = vpop.f32.mrf.mxu0
    %v562 = vadd.f32 %v539, %v561
    %563 = vdwg.mxu0
    %v564 = vmax.f32 %v562, 0.0
    %v565 = vld [vmem:[%s8] sm:$0xff]
    %v566 = vld [vmem:[%s8 + $0x8] sm:$0xff]
    %v567 = vld [vmem:[%s8 + $0x10] sm:$0xff]
    %v568 = vld [vmem:[%s8 + $0x18] sm:$0xff]
    %v569 = vld [vmem:[%s9] sm:$0x1]
    %v571 = vperm.slane %v569, 0
    %v574 = vsel %vm153, %v564, 0
    %576 = vmatpush.msra.mxu0 0.0
    %577 = vmatpush.msra.mxu0 0.0
    %578 = vmatpush.msra.mxu0 0.0
    %579 = vmatpush.msra.mxu0 0.0
    %580 = vmatpush.msra.mxu0 0.0
    %581 = vmatpush.msra.mxu0 0.0
    %582 = vmatpush.msra.mxu0 0.0
    %583 = vmatpush.msra.mxu0 0.0
    %584 = vmatpush.msra.mxu0 0.0
    %585 = vmatpush.msra.mxu0 0.0
    %586 = vmatpush.msra.mxu0 0.0
    %587 = vmatpush.msra.mxu0 0.0
    %588 = vmatpush.msra.mxu0 %v568
    %589 = vmatpush.msra.mxu0 %v567
    %590 = vmatpush.msra.mxu0 %v566
    %591 = vmatpush.msra.mxu0 %v565
    %592 = vmatmul.f32.gmra.mxu0 %v574
    %v593 = vpop.f32.mrf.mxu0
    %v594 = vadd.f32 %v571, %v593
    %595 = vdwg.mxu0
    %v596 = vmax.f32 %v594, 0.0
    %v597 = vld [vmem:[#allocation5] sm:$0xff]
    %v598 = vld [vmem:[#allocation5 + $0x8] sm:$0xff]
    %v599 = vld [vmem:[%s11] sm:$0x1]
    %v601 = vperm.slane %v599, 0
    %v604 = vsel %vm94, %v596, 0
    %606 = vmatpush.msra.mxu0 0.0
    %607 = vmatpush.msra.mxu0 0.0
    %608 = vmatpush.msra.mxu0 0.0
    %609 = vmatpush.msra.mxu0 0.0
    %610 = vmatpush.msra.mxu0 0.0
    %611 = vmatpush.msra.mxu0 0.0
    %612 = vmatpush.msra.mxu0 0.0
    %613 = vmatpush.msra.mxu0 0.0
    %614 = vmatpush.msra.mxu0 0.0
    %615 = vmatpush.msra.mxu0 0.0
    %616 = vmatpush.msra.mxu0 0.0
    %617 = vmatpush.msra.mxu0 0.0
    %618 = vmatpush.msra.mxu0 0.0
    %619 = vmatpush.msra.mxu0 0.0
    %620 = vmatpush.msra.mxu0 %v598
    %621 = vmatpush.msra.mxu0 %v597
    %622 = vmatmul.f32.gmra.mxu0 %v604
    %v623 = vpop.f32.mrf.mxu0
    %v624 = vadd.f32 %v601, %v623
    %625 = vdwg.mxu0
    %v626 = vmax.f32 %v624, 0.0
    %v627 = vld [vmem:[%s12] sm:$0xff]
    %v628 = vld [vmem:[%s12 + $0x8] sm:$0xff]
    %v629 = vld [vmem:[%s13] sm:$0x1]
    %v631 = vperm.slane %v629, 0
    %v634 = vsel %vm94, %v626, 0
    %636 = vmatpush.msra.mxu0 0.0
    %637 = vmatpush.msra.mxu0 0.0
    %638 = vmatpush.msra.mxu0 0.0
    %639 = vmatpush.msra.mxu0 0.0
    %640 = vmatpush.msra.mxu0 0.0
    %641 = vmatpush.msra.mxu0 0.0
    %642 = vmatpush.msra.mxu0 0.0
    %643 = vmatpush.msra.mxu0 0.0
    %644 = vmatpush.msra.mxu0 0.0
    %645 = vmatpush.msra.mxu0 0.0
    %646 = vmatpush.msra.mxu0 0.0
    %647 = vmatpush.msra.mxu0 0.0
    %648 = vmatpush.msra.mxu0 0.0
    %649 = vmatpush.msra.mxu0 0.0
    %650 = vmatpush.msra.mxu0 %v628
    %651 = vmatpush.msra.mxu0 %v627
    %652 = vmatmul.f32.gmra.mxu0 %v634
    %v653 = vpop.f32.mrf.mxu0
    %v654 = vadd.f32 %v631, %v653
    %655 = vdwg.mxu0
    %v656 = vmax.f32 %v654, 0.0
    %vm657 = vcmask 27648
    %658 = vst.msk [vmem:[#allocation7] sm:$0xf] %vm657, %v656
    // Predicated region
    $region66: #{tpu_custom_call.1} parent=1 // pred_check
      _
    $region67: #{tpu_custom_call.1} parent=1 // pred_check_branch
      %660 = sbr.rel (0) target = $region69
    $region68: #{tpu_custom_call.1} parent=1 // pred_region
      %662 = vsyncadd [#allocation4], 0
      %s664 = sshll.u32 [#allocation7], 4
      %s665 = int_to_ptr.vmem [resolvable:$true] %s664
      %s666 = sshll.u32 %s14, 4
      %s667 = int_to_ptr.hbm [resolvable:$true] %s666
      %669 = dma.vmem_to_hbm [thread:$0]  %s665, 64, %s667, [#allocation4]
    $region69: #{tpu_custom_call.1} parent=1 // pred_fallthru
      _
    // Predicated region
    $region70: #{tpu_custom_call.1} parent=1 // pred_check
      _
    $region71: #{tpu_custom_call.1} parent=1 // pred_check_branch
      %671 = sbr.rel (0) target = $region73
    $region72: #{tpu_custom_call.1} parent=1 // pred_region
      %673 = dma.done [#allocation4], 64
    $region73: #{tpu_custom_call.1} parent=1 // pred_fallthru
      _
    %674 = vsyncpa [#allocation3], 1
    %675 = vsyncpa [#allocation6], 1
    %676 = vsyncpa [#allocation4], 1

</llo_original>
